<compile_context>
chip_gen: v5e
topology: v5e:2x2
jax: 0.10.0
libtpu: 0.0.40
codegen_flags: <defaults>
</compile_context>

<pallas_src>
from functools import partial

import jax
import jax.numpy as jnp
from jax.experimental import pallas as pl
from jax.experimental.pallas import tpu as pltpu

EMB_DIM = 100     # matches nn.Linear(100, 128) input
HIDDEN = 128
N_CLASSES = 4


def _round_up(x, m):
    return (x + m - 1) // m * m


def _cdiv(a, b):
    return -(-a // b)


def dense_network_kernel(ids_ref, wf_ref, b1_ref, w2_ref, b2_ref, out_ref):
    # ids_ref: [TB, S]          int32  (batch tile of token ids)
    # wf_ref:  [V_PAD, H_PAD]   bf16   (fused  embedding_table @ fc1.weight.T, resident)
    # b1_ref:  [1, H_PAD]       f32
    # w2_ref:  [H_PAD, C_PAD]   bf16   (fc2.weight.T, resident)
    # b2_ref:  [1, C_PAD]       f32
    # out_ref: [TB, C]          f32    (real class width -> masked, narrow HBM writeback)
    tb, seq = ids_ref.shape
    v_pad = wf_ref.shape[0]
    c = out_ref.shape[1]

    ids = ids_ref[...]                                                   # [TB, S] int32
    lane_iota = jax.lax.broadcasted_iota(jnp.int32, (1, v_pad), 1)       # [1, V_PAD]

    # Per-row token counts over the padded vocab: counts[b, v] = #{s : ids[b, s] == v}.
    # S is a small static constant -> unrolled broadcast compares on the VPU.
    # Accumulate in int32 (v5e VPU has no bf16 elementwise), cast once afterwards.
    counts = jnp.zeros((tb, v_pad), dtype=jnp.int32)
    for pos in range(seq):
        counts = counts + (ids[:, pos:pos + 1] == lane_iota).astype(jnp.int32)
    counts_bf = counts.astype(jnp.bfloat16)      # exact: integer values <= S

    # (embedding lookup + sum over seq + fc1) fused into ONE bf16 MXU matmul.
    h = jnp.dot(counts_bf, wf_ref[...],
                preferred_element_type=jnp.float32) + b1_ref[...]        # [TB, H_PAD] f32
    h = jnp.maximum(h, 0.0)

    # Dropout(p=0.4): eval-mode identity.
    # TODO(synk): training-mode dropout (pltpu.prng_random_bits mask scaled by 1/(1-p)).

    # fc2 (bf16 MXU, f32 accumulation); store only the real class lanes.
    logits = jnp.dot(h.astype(jnp.bfloat16), w2_ref[...],
                     preferred_element_type=jnp.float32) + b2_ref[...]   # [TB, C_PAD]
    out_ref[...] = logits[:, :c]


def prepare_params(embeddings, w1, b1, w2, b2):
    """One-time parameter preparation (padding + algebraic table@w1 fusion).
    embeddings: [V, E] f32; w1: [E, H]; b1: [H]; w2: [H, C]; b2: [C]."""
    V, E = embeddings.shape
    _, H = w1.shape
    _, C = w2.shape

    V_PAD = _round_up(V, 128)
    H_PAD = _round_up(H, 128)
    C_PAD = _round_up(C, 128)

    # Fuse embedding table with fc1 weight in f32, then quantize to bf16 for the MXU.
    wf = embeddings.astype(jnp.float32) @ w1.astype(jnp.float32)           # [V, H]
    wf_p = (jnp.zeros((V_PAD, H_PAD), jnp.float32)
            .at[:V, :H].set(wf).astype(jnp.bfloat16))
    b1_p = jnp.zeros((1, H_PAD), jnp.float32).at[0, :H].set(b1.astype(jnp.float32))
    w2_p = (jnp.zeros((H_PAD, C_PAD), jnp.float32)
            .at[:H, :C].set(w2.astype(jnp.float32)).astype(jnp.bfloat16))
    b2_p = jnp.zeros((1, C_PAD), jnp.float32).at[0, :C].set(b2.astype(jnp.float32))
    return wf_p, b1_p, w2_p, b2_p, C


@partial(jax.jit, static_argnames=("n_classes", "max_batch_tile"))
def dense_network_forward(token_ids, wf_p, b1_p, w2_p, b2_p, n_classes,
                          max_batch_tile=256):
    """token_ids: [B, S] int.  Returns logits [B, n_classes] f32 (torch eval forward)."""
    B, S = token_ids.shape
    V_PAD, H_PAD = wf_p.shape
    _, C_PAD = w2_p.shape
    C = n_classes

    # Batch tiling: keep tiles in-register (<= max_batch_tile rows), and for large B
    # guarantee >= 2 grid steps so both v7x TensorCores get work, with bounded padding.
    if B > 8:
        n_tiles = max(2, _cdiv(B, max_batch_tile))
        TB = min(max_batch_tile, _round_up(_cdiv(B, n_tiles), 8))
    else:
        TB = _round_up(B, 8)
    B_pad = _round_up(B, TB)
    ids_p = jnp.zeros((B_pad, S), jnp.int32).at[:B, :].set(token_ids.astype(jnp.int32))

    grid = (B_pad // TB,)
    const = lambda i: (0, 0)   # resident operands: DMA'd once, reused every grid step

    flops = 2 * B_pad * (V_PAD * H_PAD + H_PAD * C_PAD)
    bytes_accessed = (
        B_pad * S * 4                 # token ids
        + V_PAD * H_PAD * 2           # fused table@w1 (bf16)
        + H_PAD * 4 + C_PAD * 4       # biases
        + H_PAD * C_PAD * 2           # fc2 weight (bf16)
        + B_pad * C * 4               # logits writeback (real class width)
    )

    out_padded = pl.pallas_call(
        dense_network_kernel,
        out_shape=jax.ShapeDtypeStruct((B_pad, C), jnp.float32),
        grid=grid,
        in_specs=[
            pl.BlockSpec((TB, S), lambda i: (i, 0)),      # token ids, streamed per tile
            pl.BlockSpec((V_PAD, H_PAD), const),          # fused table@w1 (bf16, resident)
            pl.BlockSpec((1, H_PAD), const),              # fc1.bias
            pl.BlockSpec((H_PAD, C_PAD), const),          # fc2.weight.T (bf16, resident)
            pl.BlockSpec((1, C_PAD), const),              # fc2.bias
        ],
        out_specs=pl.BlockSpec((TB, C), lambda i: (i, 0)),
        compiler_params=pltpu.CompilerParams(
            dimension_semantics=("parallel",),
        ),
        cost_estimate=pl.CostEstimate(
            flops=flops, transcendentals=0, bytes_accessed=bytes_accessed),
    )(ids_p, wf_p, b1_p, w2_p, b2_p)

    return out_padded[:B, :]


def reference_forward(token_ids, embeddings, w1, b1, w2, b2):
    x = jnp.take(embeddings, token_ids, axis=0).astype(jnp.float32)
    x = jnp.sum(x, axis=1)
    h = jnp.maximum(x @ w1 + b1, 0.0)
    return h @ w2 + b2


if __name__ == "__main__":
    key = jax.random.PRNGKey(0)
    k_emb, k_w1, k_b1, k_w2, k_b2, k_tok = jax.random.split(key, 6)

    VOCAB = 50
    B, S = 8, 8

    # Deterministic synthetic parameters (shapes dictated by the module __init__).
    embeddings = jax.random.normal(k_emb, (VOCAB, EMB_DIM), dtype=jnp.float32) * 0.1
    w1 = jax.random.normal(k_w1, (EMB_DIM, HIDDEN), dtype=jnp.float32) * 0.05   # fc1.weight.T
    b1 = jax.random.normal(k_b1, (HIDDEN,), dtype=jnp.float32) * 0.05           # fc1.bias
    w2 = jax.random.normal(k_w2, (HIDDEN, N_CLASSES), dtype=jnp.float32) * 0.05 # fc2.weight.T
    b2 = jax.random.normal(k_b2, (N_CLASSES,), dtype=jnp.float32) * 0.05        # fc2.bias

    token_ids = jax.random.randint(k_tok, (B, S), 0, VOCAB, dtype=jnp.int32)

    # One-time parameter prep (padding + table@w1 fusion), then the fused kernel.
    wf_p, b1_p, w2_p, b2_p, C = prepare_params(embeddings, w1, b1, w2, b2)
    logits = dense_network_forward(token_ids, wf_p, b1_p, w2_p, b2_p, C)
    logits = jax.block_until_ready(logits)

    ref = reference_forward(token_ids, embeddings, w1, b1, w2, b2)
    assert logits.shape == (B, N_CLASSES)
    # bf16 MXU operands (f32 accumulation) -> compare with a bf16-level tolerance.
    assert jnp.allclose(logits, ref, atol=2e-2, rtol=2e-2), "mismatch vs reference"

    print("KERNEL_OK")
</pallas_src>

<mosaic_0001>
module attributes {stable_mosaic.version = 11 : i64} {
  func.func @dense_network_kernel(%arg0: i32, %arg1: memref<8x8xi32, #tpu.memory_space<vmem>>, %arg2: memref<128x128xbf16, #tpu.memory_space<vmem>>, %arg3: memref<1x128xf32, #tpu.memory_space<vmem>>, %arg4: memref<128x128xbf16, #tpu.memory_space<vmem>>, %arg5: memref<1x128xf32, #tpu.memory_space<vmem>>, %arg6: memref<8x4xf32, #tpu.memory_space<vmem>>) attributes {dimension_semantics = [#tpu.dimension_semantics<parallel>], iteration_bounds = array<i64: 1>, scalar_prefetch = 0 : i64, scratch_operands = 0 : i64, tpu.core_type = #tpu.core_type<tc>, window_params = [{transform_indices = @transform_0, window_bounds = array<i64: 8, 8>}, {pipeline_mode = #tpu.pipeline_mode<synchronous>, transform_indices = @transform_1, window_bounds = array<i64: 128, 128>}, {pipeline_mode = #tpu.pipeline_mode<synchronous>, transform_indices = @transform_2, window_bounds = array<i64: 1, 128>}, {pipeline_mode = #tpu.pipeline_mode<synchronous>, transform_indices = @transform_3, window_bounds = array<i64: 128, 128>}, {pipeline_mode = #tpu.pipeline_mode<synchronous>, transform_indices = @transform_4, window_bounds = array<i64: 1, 128>}, {transform_indices = @transform_5, window_bounds = array<i64: 8, 4>}]} {
    %c0 = arith.constant 0 : index
    %c0_0 = arith.constant 0 : index
    %0 = vector.load %arg1[%c0, %c0_0] : memref<8x8xi32, #tpu.memory_space<vmem>>, vector<8x8xi32>
    %1 = tpu.iota {dimensions = array<i32: 1>} : vector<1x128xi32>
    %c0_i32 = arith.constant 0 : i32
    %2 = vector.broadcast %c0_i32 : i32 to vector<8x128xi32>
    %3 = vector.extract_strided_slice %0 {offsets = [0, 0], sizes = [8, 1], strides = [1, 1]} : vector<8x8xi32> to vector<8x1xi32>
    %4 = vector.broadcast %3 : vector<8x1xi32> to vector<8x128xi32>
    %5 = vector.broadcast %1 : vector<1x128xi32> to vector<8x128xi32>
    %6 = arith.cmpi eq, %4, %5 : vector<8x128xi32>
    %7 = arith.extui %6 : vector<8x128xi1> to vector<8x128xi32>
    %8 = arith.addi %2, %7 : vector<8x128xi32>
    %9 = vector.extract_strided_slice %0 {offsets = [0, 1], sizes = [8, 1], strides = [1, 1]} : vector<8x8xi32> to vector<8x1xi32>
    %10 = vector.broadcast %9 : vector<8x1xi32> to vector<8x128xi32>
    %11 = vector.broadcast %1 : vector<1x128xi32> to vector<8x128xi32>
    %12 = arith.cmpi eq, %10, %11 : vector<8x128xi32>
    %13 = arith.extui %12 : vector<8x128xi1> to vector<8x128xi32>
    %14 = arith.addi %8, %13 : vector<8x128xi32>
    %15 = vector.extract_strided_slice %0 {offsets = [0, 2], sizes = [8, 1], strides = [1, 1]} : vector<8x8xi32> to vector<8x1xi32>
    %16 = vector.broadcast %15 : vector<8x1xi32> to vector<8x128xi32>
    %17 = vector.broadcast %1 : vector<1x128xi32> to vector<8x128xi32>
    %18 = arith.cmpi eq, %16, %17 : vector<8x128xi32>
    %19 = arith.extui %18 : vector<8x128xi1> to vector<8x128xi32>
    %20 = arith.addi %14, %19 : vector<8x128xi32>
    %21 = vector.extract_strided_slice %0 {offsets = [0, 3], sizes = [8, 1], strides = [1, 1]} : vector<8x8xi32> to vector<8x1xi32>
    %22 = vector.broadcast %21 : vector<8x1xi32> to vector<8x128xi32>
    %23 = vector.broadcast %1 : vector<1x128xi32> to vector<8x128xi32>
    %24 = arith.cmpi eq, %22, %23 : vector<8x128xi32>
    %25 = arith.extui %24 : vector<8x128xi1> to vector<8x128xi32>
    %26 = arith.addi %20, %25 : vector<8x128xi32>
    %27 = vector.extract_strided_slice %0 {offsets = [0, 4], sizes = [8, 1], strides = [1, 1]} : vector<8x8xi32> to vector<8x1xi32>
    %28 = vector.broadcast %27 : vector<8x1xi32> to vector<8x128xi32>
    %29 = vector.broadcast %1 : vector<1x128xi32> to vector<8x128xi32>
    %30 = arith.cmpi eq, %28, %29 : vector<8x128xi32>
    %31 = arith.extui %30 : vector<8x128xi1> to vector<8x128xi32>
    %32 = arith.addi %26, %31 : vector<8x128xi32>
    %33 = vector.extract_strided_slice %0 {offsets = [0, 5], sizes = [8, 1], strides = [1, 1]} : vector<8x8xi32> to vector<8x1xi32>
    %34 = vector.broadcast %33 : vector<8x1xi32> to vector<8x128xi32>
    %35 = vector.broadcast %1 : vector<1x128xi32> to vector<8x128xi32>
    %36 = arith.cmpi eq, %34, %35 : vector<8x128xi32>
    %37 = arith.extui %36 : vector<8x128xi1> to vector<8x128xi32>
    %38 = arith.addi %32, %37 : vector<8x128xi32>
    %39 = vector.extract_strided_slice %0 {offsets = [0, 6], sizes = [8, 1], strides = [1, 1]} : vector<8x8xi32> to vector<8x1xi32>
    %40 = vector.broadcast %39 : vector<8x1xi32> to vector<8x128xi32>
    %41 = vector.broadcast %1 : vector<1x128xi32> to vector<8x128xi32>
    %42 = arith.cmpi eq, %40, %41 : vector<8x128xi32>
    %43 = arith.extui %42 : vector<8x128xi1> to vector<8x128xi32>
    %44 = arith.addi %38, %43 : vector<8x128xi32>
    %45 = vector.extract_strided_slice %0 {offsets = [0, 7], sizes = [8, 1], strides = [1, 1]} : vector<8x8xi32> to vector<8x1xi32>
    %46 = vector.broadcast %45 : vector<8x1xi32> to vector<8x128xi32>
    %47 = vector.broadcast %1 : vector<1x128xi32> to vector<8x128xi32>
    %48 = arith.cmpi eq, %46, %47 : vector<8x128xi32>
    %49 = arith.extui %48 : vector<8x128xi1> to vector<8x128xi32>
    %50 = arith.addi %44, %49 : vector<8x128xi32>
    %51 = arith.sitofp %50 : vector<8x128xi32> to vector<8x128xbf16>
    %c0_1 = arith.constant 0 : index
    %c0_2 = arith.constant 0 : index
    %52 = vector.load %arg2[%c0_1, %c0_2] : memref<128x128xbf16, #tpu.memory_space<vmem>>, vector<128x128xbf16>
    %cst = arith.constant dense<0.000000e+00> : vector<8x128xf32>
    %53 = tpu.matmul %51, %52, %cst {dimension_numbers = #tpu.dot_dimension_numbers<[1], [0], [0], [1], [0, 0, 1, 1], [], []>} : vector<8x128xbf16>, vector<128x128xbf16>, vector<8x128xf32> -> vector<8x128xf32>
    %c0_3 = arith.constant 0 : index
    %c0_4 = arith.constant 0 : index
    %54 = vector.load %arg3[%c0_3, %c0_4] : memref<1x128xf32, #tpu.memory_space<vmem>>, vector<1x128xf32>
    %55 = vector.broadcast %54 : vector<1x128xf32> to vector<8x128xf32>
    %56 = arith.addf %53, %55 : vector<8x128xf32>
    %cst_5 = arith.constant 0.000000e+00 : f32
    %57 = vector.broadcast %cst_5 : f32 to vector<8x128xf32>
    %58 = arith.maximumf %56, %57 : vector<8x128xf32>
    %59 = arith.truncf %58 : vector<8x128xf32> to vector<8x128xbf16>
    %c0_6 = arith.constant 0 : index
    %c0_7 = arith.constant 0 : index
    %60 = vector.load %arg4[%c0_6, %c0_7] : memref<128x128xbf16, #tpu.memory_space<vmem>>, vector<128x128xbf16>
    %cst_8 = arith.constant dense<0.000000e+00> : vector<8x128xf32>
    %61 = tpu.matmul %59, %60, %cst_8 {dimension_numbers = #tpu.dot_dimension_numbers<[1], [0], [0], [1], [0, 0, 1, 1], [], []>} : vector<8x128xbf16>, vector<128x128xbf16>, vector<8x128xf32> -> vector<8x128xf32>
    %c0_9 = arith.constant 0 : index
    %c0_10 = arith.constant 0 : index
    %62 = vector.load %arg5[%c0_9, %c0_10] : memref<1x128xf32, #tpu.memory_space<vmem>>, vector<1x128xf32>
    %63 = vector.broadcast %62 : vector<1x128xf32> to vector<8x128xf32>
    %64 = arith.addf %61, %63 : vector<8x128xf32>
    %65 = vector.extract_strided_slice %64 {offsets = [0, 0], sizes = [8, 4], strides = [1, 1]} : vector<8x128xf32> to vector<8x4xf32>
    %c0_11 = arith.constant 0 : index
    %c0_12 = arith.constant 0 : index
    %66 = vector.load %arg6[%c0_11, %c0_12] : memref<8x4xf32, #tpu.memory_space<vmem>>, vector<8x4xf32>
    tpu.vector_store %arg6[%c0_11, %c0_12], %65 {strides = array<i32>} : memref<8x4xf32, #tpu.memory_space<vmem>>, vector<8x4xf32>,
    return
  }
  func.func @transform_0(%arg0: i32) -> (i32, i32) {
    %c0_i32 = arith.constant 0 : i32
    %c0_i32_0 = arith.constant 0 : i32
    return %arg0, %c0_i32 : i32, i32
  }
  func.func @transform_1(%arg0: i32) -> (i32, i32) {
    %c0_i32 = arith.constant 0 : i32
    %c0_i32_0 = arith.constant 0 : i32
    %c0_i32_1 = arith.constant 0 : i32
    return %c0_i32, %c0_i32_0 : i32, i32
  }
  func.func @transform_2(%arg0: i32) -> (i32, i32) {
    %c0_i32 = arith.constant 0 : i32
    %c0_i32_0 = arith.constant 0 : i32
    %c0_i32_1 = arith.constant 0 : i32
    return %c0_i32, %c0_i32_0 : i32, i32
  }
  func.func @transform_3(%arg0: i32) -> (i32, i32) {
    %c0_i32 = arith.constant 0 : i32
    %c0_i32_0 = arith.constant 0 : i32
    %c0_i32_1 = arith.constant 0 : i32
    return %c0_i32, %c0_i32_0 : i32, i32
  }
  func.func @transform_4(%arg0: i32) -> (i32, i32) {
    %c0_i32 = arith.constant 0 : i32
    %c0_i32_0 = arith.constant 0 : i32
    %c0_i32_1 = arith.constant 0 : i32
    return %c0_i32, %c0_i32_0 : i32, i32
  }
  func.func @transform_5(%arg0: i32) -> (i32, i32) {
    %c0_i32 = arith.constant 0 : i32
    %c0_i32_0 = arith.constant 0 : i32
    return %arg0, %c0_i32 : i32, i32
  }
}

</mosaic_0001>

<llo_original>
// kernel: dense_network_forward.1
$region0: #{dense_network_forward.1}
  #allocation0 [shape = 'u32[]', space=smem, size = 0x4, offset = 0x4, fixed_abs, tag = 'smem constant byte address 0x4 - core index']
  #allocation1 [shape = 'u32[72,128]{1,0:T(1,128)}', space=vmem, size = 0x9000, scoped, tag = 'internal scratch']
  %s0 = inlined_call_operand.hbm [shape: s32[8,8], index: 0, kind: input, shape index: {}]
  %s1 = inlined_call_operand.hbm [shape: bf16[128,128], index: 1, kind: input, shape index: {}]
  %s2 = inlined_call_operand.vmem [shape: f32[1,128], index: 2, kind: input, shape index: {}]
  %s3 = inlined_call_operand.hbm [shape: bf16[128,128], index: 3, kind: input, shape index: {}]
  %s4 = inlined_call_operand.vmem [shape: f32[1,128], index: 4, kind: input, shape index: {}]
  %s5 = inlined_call_operand.vmem [shape: f32[8,4], index: 5, kind: output, shape index: {}]
  %s6 = sld [smem:[#allocation0]]
  $region42: #{dense_network_forward.1} parent=0
    _
  %s8 = ssub.s32 1, %s6
  %s9 = scalar_select 0, %s8, %s6
  $region1: #{dense_network_forward.1} parent=0
    #allocation2 [shape = 'u8[4096]{0}', space=vmem, size = 0x1000, scoped, tag = 'input window, operand 0, single buffered']
    #allocation3 [shape = 's32[1]{0}', space=sflag, size = 0x4, scoped, tag = 'scoped memory for dense_network_forward.1']
    #allocation4 [shape = 'u8[32768]{0}', space=vmem, size = 0x8000, scoped, tag = 'input window, operand 1, single buffered']
    #allocation5 [shape = 's32[1]{0}', space=sflag, size = 0x4, scoped, tag = 'scoped memory for dense_network_forward.1']
    #allocation6 [shape = 'u8[32768]{0}', space=vmem, size = 0x8000, scoped, tag = 'input window, operand 3, single buffered']
    %10 = vsyncpa [#allocation3], 0
    %11 = vsyncpa [#allocation5], 0
    // Predicated region
    $region2: #{dense_network_forward.1} parent=1 // pred_check
      _
    $region3: #{dense_network_forward.1} parent=1 // pred_check_branch
      %13 = sbr.rel (0) target = $region5
    $region4: #{dense_network_forward.1} parent=1 // pred_region
      %15 = vsyncadd [#allocation3], 0
      %s17 = sshll.u32 %s0, 4
      %s18 = int_to_ptr.hbm [resolvable:$true] %s17
      %s19 = sshll.u32 [#allocation2], 4
      %s20 = int_to_ptr.vmem [resolvable:$true] %s19
      %22 = dma.hbm_to_vmem [thread:$0]  %s18, 128, %s20, [#allocation3]
    $region5: #{dense_network_forward.1} parent=1 // pred_fallthru
      _
    // Predicated region
    $region6: #{dense_network_forward.1} parent=1 // pred_check
      _
    $region7: #{dense_network_forward.1} parent=1 // pred_check_branch
      %24 = sbr.rel (0) target = $region9
    $region8: #{dense_network_forward.1} parent=1 // pred_region
      %26 = vsyncadd [#allocation5], 0
      %s27 = sshll.u32 %s1, 4
      %s28 = int_to_ptr.hbm [resolvable:$true] %s27
      %s29 = sshll.u32 [#allocation4], 4
      %s30 = int_to_ptr.vmem [resolvable:$true] %s29
      %35 = dma.hbm_to_vmem [thread:$0]  %s28, 1024, %s30, [#allocation5], 64, 64, 4
    $region9: #{dense_network_forward.1} parent=1 // pred_fallthru
      _
    // Predicated region
    $region10: #{dense_network_forward.1} parent=1 // pred_check
      _
    $region11: #{dense_network_forward.1} parent=1 // pred_check_branch
      %37 = sbr.rel (0) target = $region13
    $region12: #{dense_network_forward.1} parent=1 // pred_region
      _
    $region13: #{dense_network_forward.1} parent=1 // pred_fallthru
      _
    // Predicated region
    $region14: #{dense_network_forward.1} parent=1 // pred_check
      _
    $region15: #{dense_network_forward.1} parent=1 // pred_check_branch
      %39 = sbr.rel (0) target = $region17
    $region16: #{dense_network_forward.1} parent=1 // pred_region
      %41 = vsyncadd [#allocation5], 0
      %s42 = sshll.u32 %s3, 4
      %s43 = int_to_ptr.hbm [resolvable:$true] %s42
      %s44 = sshll.u32 [#allocation6], 4
      %s45 = int_to_ptr.vmem [resolvable:$true] %s44
      %50 = dma.hbm_to_vmem [thread:$0]  %s43, 1024, %s45, [#allocation5], 64, 64, 4
    $region17: #{dense_network_forward.1} parent=1 // pred_fallthru
      _
    // Predicated region
    $region18: #{dense_network_forward.1} parent=1 // pred_check
      _
    $region19: #{dense_network_forward.1} parent=1 // pred_check_branch
      %52 = sbr.rel (0) target = $region21
    $region20: #{dense_network_forward.1} parent=1 // pred_region
      _
    $region21: #{dense_network_forward.1} parent=1 // pred_fallthru
      _
    // Predicated region
    $region22: #{dense_network_forward.1} parent=1 // pred_check
      _
    $region23: #{dense_network_forward.1} parent=1 // pred_check_branch
      %54 = sbr.rel (0) target = $region25
    $region24: #{dense_network_forward.1} parent=1 // pred_region
      %56 = dma.done [#allocation3], 128
    $region25: #{dense_network_forward.1} parent=1 // pred_fallthru
      _
    // Predicated region
    $region26: #{dense_network_forward.1} parent=1 // pred_check
      _
    $region27: #{dense_network_forward.1} parent=1 // pred_check_branch
      %58 = sbr.rel (0) target = $region29
    $region28: #{dense_network_forward.1} parent=1 // pred_region
      %60 = dma.done [#allocation5], 1024
    $region29: #{dense_network_forward.1} parent=1 // pred_fallthru
      _
    // Predicated region
    $region30: #{dense_network_forward.1} parent=1 // pred_check
      _
    $region31: #{dense_network_forward.1} parent=1 // pred_check_branch
      %62 = sbr.rel (0) target = $region33
    $region32: #{dense_network_forward.1} parent=1 // pred_region
      %64 = dma.done [#allocation5], 1024
    $region33: #{dense_network_forward.1} parent=1 // pred_fallthru
      _
    %v65 = vld [vmem:[#allocation2] sm:$0xff]
    %v66 = vlaneseq
    %v67 = vand.u32 %v66, 127
    %68 = vset.pattern.permute.xlu0 0
    %69 = vperm.xlu0 %68, %v65
    %v70 = vpop.permute.xlu0 %69
    %vm71 = vcmp.eq.s32.totalorder %v70, %v67
    %v72 = vsel %vm71, 1, 0
    %73 = vset.pattern.permute.xlu0 1
    %74 = vperm.xlu0 %73, %v65
    %v75 = vpop.permute.xlu0 %74
    %vm76 = vcmp.eq.s32.totalorder %v75, %v67
    %v77 = vsel %vm76, 1, 0
    %v78 = vadd.s32 %v72, %v77
    %79 = vset.pattern.permute.xlu0 2
    %80 = vperm.xlu0 %79, %v65
    %v81 = vpop.permute.xlu0 %80
    %vm82 = vcmp.eq.s32.totalorder %v81, %v67
    %v83 = vsel %vm82, 1, 0
    %v84 = vadd.s32 %v78, %v83
    %85 = vset.pattern.permute.xlu0 3
    %86 = vperm.xlu0 %85, %v65
    %v87 = vpop.permute.xlu0 %86
    %vm88 = vcmp.eq.s32.totalorder %v87, %v67
    %v89 = vsel %vm88, 1, 0
    %v90 = vadd.s32 %v84, %v89
    %91 = vset.pattern.permute.xlu0 4
    %92 = vperm.xlu0 %91, %v65
    %v93 = vpop.permute.xlu0 %92
    %vm94 = vcmp.eq.s32.totalorder %v93, %v67
    %v95 = vsel %vm94, 1, 0
    %v96 = vadd.s32 %v90, %v95
    %97 = vset.pattern.permute.xlu0 5
    %98 = vperm.xlu0 %97, %v65
    %v99 = vpop.permute.xlu0 %98
    %vm100 = vcmp.eq.s32.totalorder %v99, %v67
    %v101 = vsel %vm100, 1, 0
    %v102 = vadd.s32 %v96, %v101
    %103 = vset.pattern.permute.xlu0 6
    %104 = vperm.xlu0 %103, %v65
    %v105 = vpop.permute.xlu0 %104
    %vm106 = vcmp.eq.s32.totalorder %v105, %v67
    %v107 = vsel %vm106, 1, 0
    %v108 = vadd.s32 %v102, %v107
    %109 = vset.pattern.permute.xlu0 7
    %110 = vperm.xlu0 %109, %v65
    %v111 = vpop.permute.xlu0 %110
    %vm112 = vcmp.eq.s32.totalorder %v111, %v67
    %v113 = vsel %vm112, 1, 0
    %v114 = vadd.s32 %v108, %v113
    %v115 = vcvt.s32.f32 %v114
    %v116 = vpack.c.bf16 %v115, %v115
    %v117 = vld [vmem:[#allocation4] sm:$0xf]
    %v118 = vld [vmem:[#allocation4 + $0x4] sm:$0xf]
    %v119 = vld [vmem:[#allocation4 + $0x8] sm:$0xf]
    %v120 = vld [vmem:[#allocation4 + $0xc] sm:$0xf]
    %v121 = vld [vmem:[#allocation4 + $0x10] sm:$0xf]
    %v122 = vld [vmem:[#allocation4 + $0x14] sm:$0xf]
    %v123 = vld [vmem:[#allocation4 + $0x18] sm:$0xf]
    %v124 = vld [vmem:[#allocation4 + $0x1c] sm:$0xf]
    %v125 = vld [vmem:[#allocation4 + $0x20] sm:$0xf]
    %v126 = vld [vmem:[#allocation4 + $0x24] sm:$0xf]
    %v127 = vld [vmem:[#allocation4 + $0x28] sm:$0xf]
    %v128 = vld [vmem:[#allocation4 + $0x2c] sm:$0xf]
    %v129 = vld [vmem:[#allocation4 + $0x30] sm:$0xf]
    %v130 = vld [vmem:[#allocation4 + $0x34] sm:$0xf]
    %v131 = vld [vmem:[#allocation4 + $0x38] sm:$0xf]
    %v132 = vld [vmem:[#allocation4 + $0x3c] sm:$0xf]
    %v133 = vld [vmem:[%s2] sm:$0x1]
    %v135 = vperm.slane %v133, 0
    %v153 = vunpack.c.l.b16 %v117
    %v154 = vunpack.c.l.b16 %v118
    %v155 = vunpack.c.l.b16 %v119
    %v156 = vunpack.c.l.b16 %v120
    %v157 = vunpack.c.l.b16 %v121
    %v158 = vunpack.c.l.b16 %v122
    %v159 = vunpack.c.l.b16 %v123
    %v160 = vunpack.c.l.b16 %v124
    %v161 = vunpack.c.l.b16 %v125
    %v162 = vunpack.c.l.b16 %v126
    %v163 = vunpack.c.l.b16 %v127
    %v164 = vunpack.c.l.b16 %v128
    %v165 = vunpack.c.l.b16 %v129
    %v166 = vunpack.c.l.b16 %v130
    %v167 = vunpack.c.l.b16 %v131
    %v168 = vunpack.c.l.b16 %v132
    %v169 = vpack.c.b16 %v154, %v153
    %v170 = vpack.c.b16 %v156, %v155
    %v171 = vpack.c.b16 %v158, %v157
    %v172 = vpack.c.b16 %v160, %v159
    %v173 = vpack.c.b16 %v162, %v161
    %v174 = vpack.c.b16 %v164, %v163
    %v175 = vpack.c.b16 %v166, %v165
    %v176 = vpack.c.b16 %v168, %v167
    %185 = vmatpush.bf16.msra.mxu0 %v176
    %186 = vmatpush.bf16.msra.mxu0 %v175
    %187 = vmatpush.bf16.msra.mxu0 %v174
    %188 = vmatpush.bf16.msra.mxu0 %v173
    %189 = vmatpush.bf16.msra.mxu0 %v172
    %190 = vmatpush.bf16.msra.mxu0 %v171
    %191 = vmatpush.bf16.msra.mxu0 %v170
    %192 = vmatpush.bf16.msra.mxu0 %v169
    %193 = vmatmul.bf16.gmra.mxu0 %v116
    %v194 = vpop.f32.mrf.mxu0
    %v195 = vadd.f32 %v135, %v194
    %v196 = vpop.f32.mrf.mxu0
    %197 = vdwg.mxu0
    %v198 = vmax.f32 %v195, 0.0
    %v199 = vpack.c.bf16 %v198, %v198
    %v200 = vld [vmem:[#allocation6] sm:$0xf]
    %v201 = vld [vmem:[#allocation6 + $0x4] sm:$0xf]
    %v202 = vld [vmem:[#allocation6 + $0x8] sm:$0xf]
    %v203 = vld [vmem:[#allocation6 + $0xc] sm:$0xf]
    %v204 = vld [vmem:[#allocation6 + $0x10] sm:$0xf]
    %v205 = vld [vmem:[#allocation6 + $0x14] sm:$0xf]
    %v206 = vld [vmem:[#allocation6 + $0x18] sm:$0xf]
    %v207 = vld [vmem:[#allocation6 + $0x1c] sm:$0xf]
    %v208 = vld [vmem:[#allocation6 + $0x20] sm:$0xf]
    %v209 = vld [vmem:[#allocation6 + $0x24] sm:$0xf]
    %v210 = vld [vmem:[#allocation6 + $0x28] sm:$0xf]
    %v211 = vld [vmem:[#allocation6 + $0x2c] sm:$0xf]
    %v212 = vld [vmem:[#allocation6 + $0x30] sm:$0xf]
    %v213 = vld [vmem:[#allocation6 + $0x34] sm:$0xf]
    %v214 = vld [vmem:[#allocation6 + $0x38] sm:$0xf]
    %v215 = vld [vmem:[#allocation6 + $0x3c] sm:$0xf]
    %v216 = vld [vmem:[%s4] sm:$0x1]
    %v218 = vperm.slane %v216, 0
    %v236 = vunpack.c.l.b16 %v200
    %v237 = vunpack.c.l.b16 %v201
    %v238 = vunpack.c.l.b16 %v202
    %v239 = vunpack.c.l.b16 %v203
    %v240 = vunpack.c.l.b16 %v204
    %v241 = vunpack.c.l.b16 %v205
    %v242 = vunpack.c.l.b16 %v206
    %v243 = vunpack.c.l.b16 %v207
    %v244 = vunpack.c.l.b16 %v208
    %v245 = vunpack.c.l.b16 %v209
    %v246 = vunpack.c.l.b16 %v210
    %v247 = vunpack.c.l.b16 %v211
    %v248 = vunpack.c.l.b16 %v212
    %v249 = vunpack.c.l.b16 %v213
    %v250 = vunpack.c.l.b16 %v214
    %v251 = vunpack.c.l.b16 %v215
    %v252 = vpack.c.b16 %v237, %v236
    %v253 = vpack.c.b16 %v239, %v238
    %v254 = vpack.c.b16 %v241, %v240
    %v255 = vpack.c.b16 %v243, %v242
    %v256 = vpack.c.b16 %v245, %v244
    %v257 = vpack.c.b16 %v247, %v246
    %v258 = vpack.c.b16 %v249, %v248
    %v259 = vpack.c.b16 %v251, %v250
    %268 = vmatpush.bf16.msra.mxu0 %v259
    %269 = vmatpush.bf16.msra.mxu0 %v258
    %270 = vmatpush.bf16.msra.mxu0 %v257
    %271 = vmatpush.bf16.msra.mxu0 %v256
    %272 = vmatpush.bf16.msra.mxu0 %v255
    %273 = vmatpush.bf16.msra.mxu0 %v254
    %274 = vmatpush.bf16.msra.mxu0 %v253
    %275 = vmatpush.bf16.msra.mxu0 %v252
    %276 = vmatmul.bf16.gmra.mxu0 %v199
    %v277 = vpop.f32.mrf.mxu0
    %v278 = vadd.f32 %v218, %v277
    %v279 = vpop.f32.mrf.mxu0
    %280 = vdwg.mxu0
    %vm281 = vcmask 31744
    %282 = vst.msk [vmem:[%s5] sm:$0xff] %vm281, %v278
    // Predicated region
    $region34: #{dense_network_forward.1} parent=1 // pred_check
      _
    $region35: #{dense_network_forward.1} parent=1 // pred_check_branch
      %284 = sbr.rel (0) target = $region37
    $region36: #{dense_network_forward.1} parent=1 // pred_region
      _
    $region37: #{dense_network_forward.1} parent=1 // pred_fallthru
      _
    // Predicated region
    $region38: #{dense_network_forward.1} parent=1 // pred_check
      _
    $region39: #{dense_network_forward.1} parent=1 // pred_check_branch
      %286 = sbr.rel (0) target = $region41
    $region40: #{dense_network_forward.1} parent=1 // pred_region
      _
    $region41: #{dense_network_forward.1} parent=1 // pred_fallthru
      _
    %287 = vsyncpa [#allocation3], 1
    %288 = vsyncpa [#allocation5], 1

</llo_original>
